<compile_context>
chip_gen: v7x
topology: tpu7x:2x2x1
jax: 0.10.0
libtpu: 0.0.40
codegen_flags: <defaults>
</compile_context>

<pallas_src>
import functools
from typing import NamedTuple, Optional

import jax
import jax.numpy as jnp
from jax.experimental import pallas as pl
from jax.experimental.pallas import tpu as pltpu

_ONES_COL = 3   # column of the pixel slab that carries the ones (mask counter)


# ---------------------------------------------------------------------------
# Pallas kernels
# ---------------------------------------------------------------------------
def _matmul_bf16_kernel(x_ref, w_ref, o_ref):
    """Single-shot MXU matmul: bf16 operands, f32 accumulation, f32 store."""
    o_ref[...] = jnp.dot(x_ref[...], w_ref[...],
                         preferred_element_type=jnp.float32)


def pallas_matmul_bf16(x, w):
    """[M, K] x [K, N] -> f32 [M, N]. Operands cast to bf16 for the MXU.

    Full-array blocks (grid=(1,)), so there is no tile-divisibility hazard and
    no accumulator scratch / init pass. Asserts operands fit VMEM.
    """
    M, K = x.shape
    K2, N = w.shape
    assert K == K2
    m_pad = (-M) % 16                                  # bf16 sublane packing
    Mp = M + m_pad
    assert (Mp * K + K * N) * 2 + Mp * N * 4 < 48 * 1024 * 1024, \
        "single-shot matmul operands must fit VMEM; tile K for larger shapes"
    x_b = jnp.pad(x.astype(jnp.float32), ((0, m_pad), (0, 0))).astype(jnp.bfloat16)
    w_b = w.astype(jnp.bfloat16)
    out = pl.pallas_call(
        _matmul_bf16_kernel,
        out_shape=jax.ShapeDtypeStruct((Mp, N), jnp.float32),
        grid=(1,),
        in_specs=[pl.BlockSpec((Mp, K), lambda i: (0, 0)),
                  pl.BlockSpec((K, N), lambda i: (0, 0))],
        out_specs=pl.BlockSpec((Mp, N), lambda i: (0, 0)),
        compiler_params=pltpu.CompilerParams(
            dimension_semantics=("arbitrary",)),
    )(x_b, w_b)
    return out[:M]


def _pool_blend_kernel(masks_ref, slab_ref, boxed_ref, wd_ref, feat_ref,
                       acc_ref, *, dense_ratio, ones_col):
    """Fused: masked pixel pooling (MXU) + dense 1x1-conv projection + blend.

    masks_ref : [Np, hw_tile]  bf16 {0,1}
    slab_ref  : [hw_tile, 8]   bf16  (r, g, b, 1, 0, 0, 0, 0)
    boxed_ref : [Np, L]        f32
    wd_ref    : [8, L]         f32  (rows >= ones_col are zero)
    acc_ref   : [Np, 8]        f32  accumulator across HW tiles
    """
    k = pl.program_id(0)

    @pl.when(k == 0)
    def _():
        acc_ref[...] = jnp.zeros_like(acc_ref)

    # masked spatial reduction == matmul on the MXU (bf16 x bf16 -> f32)
    acc_ref[...] += jnp.dot(masks_ref[...], slab_ref[...],
                            preferred_element_type=jnp.float32)

    @pl.when(k == pl.num_programs(0) - 1)
    def _():
        pooled = acc_ref[...]                                  # [Np, 8]
        num_valid = pooled[:, ones_col:ones_col + 1]           # exact mask count
        valid = (num_valid > 0.0).astype(jnp.float32)          # [Np, 1]
        denom = jnp.maximum(num_valid, 1.0)                    # num_valid==0 -> 1
        # reassociated dense encoder: (masks @ pixels)/count @ w_dense
        dense_feats = jnp.dot(pooled / denom, wd_ref[...],
                              preferred_element_type=jnp.float32)   # [Np, L]
        ratios = dense_ratio * valid
        feat_ref[...] = (1.0 - ratios) * boxed_ref[...] + ratios * dense_feats


def pallas_pool_and_blend(pixel_slab, masks_flat, boxed_features, w_dense,
                          dense_ratio, ones_col, hw_tile_cap=2048):
    """pixel_slab [HW, 8], masks_flat [N, HW] -> blended features [N, L]."""
    HW, C8 = pixel_slab.shape
    N, HW2 = masks_flat.shape
    assert HW == HW2
    L = w_dense.shape[1]
    assert boxed_features.shape == (N, L)

    n_pad = (-N) % 16                                   # bf16 sublane packing
    Np = N + n_pad

    # HW reduction tiles: multiples of 128, capped so double-buffered tiles
    # stay comfortably inside v7x's 64 MiB VMEM at real resolutions.
    hw_tile = min(hw_tile_cap, pl.cdiv(HW, 128) * 128)
    hw_pad = (-HW) % hw_tile
    HWp = HW + hw_pad
    n_hw = HWp // hw_tile

    masks_p = jnp.pad(masks_flat.astype(jnp.float32),
                      ((0, n_pad), (0, hw_pad))).astype(jnp.bfloat16)
    slab_p = jnp.pad(pixel_slab.astype(jnp.float32),
                     ((0, hw_pad), (0, 0))).astype(jnp.bfloat16)
    boxed_p = jnp.pad(boxed_features.astype(jnp.float32), ((0, n_pad), (0, 0)))

    feats = pl.pallas_call(
        functools.partial(_pool_blend_kernel,
                          dense_ratio=float(dense_ratio), ones_col=ones_col),
        out_shape=jax.ShapeDtypeStruct((Np, L), jnp.float32),
        grid_spec=pltpu.PrefetchScalarGridSpec(
            num_scalar_prefetch=0,
            grid=(n_hw,),
            in_specs=[pl.BlockSpec((Np, hw_tile), lambda k: (0, k)),
                      pl.BlockSpec((hw_tile, C8), lambda k: (k, 0)),
                      pl.BlockSpec((Np, L), lambda k: (0, 0)),
                      pl.BlockSpec((C8, L), lambda k: (0, 0))],
            out_specs=pl.BlockSpec((Np, L), lambda k: (0, 0)),
            scratch_shapes=[pltpu.VMEM((Np, C8), jnp.float32)],
        ),
        compiler_params=pltpu.CompilerParams(
            dimension_semantics=("arbitrary",)),
    )(masks_p, slab_p, boxed_p, w_dense.astype(jnp.float32))
    return feats[:N]


# ---------------------------------------------------------------------------
# Glue / module translation
# ---------------------------------------------------------------------------
_MEAN = jnp.array([0.48145466, 0.4578275, 0.40821073], dtype=jnp.float32)
_STD = jnp.array([0.26862954, 0.26130258, 0.27577711], dtype=jnp.float32)


class Results(NamedTuple):
    masks: jnp.ndarray
    boxes: jnp.ndarray
    features: jnp.ndarray
    boxed_patches: jnp.ndarray
    masked_patches: Optional[jnp.ndarray]
    image_embedding: jnp.ndarray


class OpensetSegmenterJAX:
    """JAX/Pallas translation of OpensetSegmenter (synthetic sub-models)."""

    def __init__(self, key, *, use_dense=True, dense_ratio=0.9,
                 input_size=16, feature_dim=128, crop_padding=4, num_masks=8):
        self.use_dense = use_dense
        self.dense_ratio = float(dense_ratio)
        self.input_size = input_size
        self.feature_dim = feature_dim
        self.crop_padding = crop_padding
        self.num_masks = num_masks
        self.mask_value = -_MEAN / _STD  # ConstantMask(-mean/std)

        k_enc, k_dense = jax.random.split(key)
        k_in = 3 * input_size * input_size
        # deterministic synthetic weights for the CLIP-encoder stand-in
        self.w_enc = (0.02 * jax.random.normal(k_enc, (k_in, feature_dim))
                      ).astype(jnp.float32)
        # dense encoder stand-in: 1x1 conv == per-pixel matmul. Only the first
        # 3 (rgb) rows are non-zero; rows 3..7 are zero so the ones-column /
        # padding channels never contribute to the projection.
        wd3 = (0.02 * jax.random.normal(k_dense, (3, feature_dim))
               ).astype(jnp.float32)
        self.w_dense = jnp.zeros((8, feature_dim), jnp.float32).at[:3].set(wd3)

    # --- stubbed external sub-modules -------------------------------------
    def _segmenter(self, rgb_img):
        # TODO(synk): FastSAM segmenter has no Pallas equivalent; deterministic stub.
        H, W, _ = rgb_img.shape
        n = self.num_masks
        idx = jnp.arange(n)
        x0 = (idx * 3) % (W // 2)
        y0 = (idx * 5) % (H // 2)
        x1 = jnp.minimum(x0 + 8 + (idx % 5), W)
        y1 = jnp.minimum(y0 + 8 + (idx % 7), H)
        boxes = jnp.stack([x0, y0, x1, y1], axis=1).astype(jnp.float32)
        rr = jnp.arange(H)[None, :, None]
        cc = jnp.arange(W)[None, None, :]
        masks = ((rr >= y0[:, None, None]) & (rr < y1[:, None, None]) &
                 (cc >= x0[:, None, None]) & (cc < x1[:, None, None]))
        masks = masks.at[-1].set(False)  # one empty mask -> exercises num_valid==0
        return masks.astype(jnp.uint8), boxes

    def _segment_refinement(self, masks, boxes):
        # TODO(synk): SegmentRefinement internals unavailable; identity pass-through.
        return masks, boxes

    # --- preprocessing glue ------------------------------------------------
    def _normalize(self, img_chw):
        x = img_chw.astype(jnp.float32) / 255.0
        return (x - _MEAN[:, None, None]) / _STD[:, None, None]

    def _center_crop(self, img_chw, size):
        _, H, W = img_chw.shape
        r0 = (H - size) // 2
        c0 = (W - size) // 2
        return img_chw[:, r0:r0 + size, c0:c0 + size]

    def _crop_resize(self, img_chw, box):
        """Nearest crop-resize of a (possibly padded) box to input_size."""
        C, H, W = img_chw.shape
        S = self.input_size
        pad = float(self.crop_padding)
        x0 = jnp.clip(box[0] - pad, 0.0, W - 1.0)
        y0 = jnp.clip(box[1] - pad, 0.0, H - 1.0)
        x1 = jnp.clip(box[2] + pad, x0 + 1.0, float(W))
        y1 = jnp.clip(box[3] + pad, y0 + 1.0, float(H))
        fr = jnp.arange(S, dtype=jnp.float32) / S
        ys = jnp.clip(jnp.floor(y0 + (y1 - y0) * fr).astype(jnp.int32), 0, H - 1)
        xs = jnp.clip(jnp.floor(x0 + (x1 - x0) * fr).astype(jnp.int32), 0, W - 1)
        return img_chw[:, ys[:, None], xs[None, :]]

    def _patch_extractor(self, img_chw, boxes, masks):
        def boxed_one(box):
            return self._normalize(self._crop_resize(img_chw, box))

        boxed = jax.vmap(boxed_one)(boxes)                       # [N, 3, S, S]
        if masks is None:
            return boxed, None

        def masked_one(box, mask):
            patch = self._normalize(self._crop_resize(img_chw, box))
            mp = self._crop_resize(mask[None].astype(jnp.float32), box)[0]
            m = (mp > 0.5).astype(jnp.float32)
            return (patch * m[None] +
                    self.mask_value[:, None, None] * (1.0 - m[None]))

        masked = jax.vmap(masked_one)(boxes, masks)              # [N, 3, S, S]
        return boxed, masked

    # --- dense-path helpers (plain-JAX glue) --------------------------------
    def _dense_pixel_slab(self, img_norm):
        """[3, H, W] -> [He*Wd, 8] slab: (r, g, b, 1, 0, 0, 0, 0)."""
        C, H, W = img_norm.shape
        He, Wd = H // 2, W // 2
        pooled = img_norm.reshape(C, He, 2, Wd, 2).mean(axis=(2, 4))   # [3, He, Wd]
        x = pooled.transpose(1, 2, 0).reshape(He * Wd, C)              # [HW, 3]
        ones = jnp.ones((He * Wd, 1), jnp.float32)                     # mask counter
        zeros = jnp.zeros((He * Wd, 8 - C - 1), jnp.float32)
        return jnp.concatenate([x, ones, zeros], axis=1)               # [HW, 8]

    def _downscale_masks(self, masks, He, Wd):
        """Nearest-neighbor downscale (matches F.interpolate mode='nearest')."""
        N, H, W = masks.shape
        ys = (jnp.arange(He) * H) // He
        xs = (jnp.arange(Wd) * W) // Wd
        down = masks[:, ys[:, None], xs[None, :]].astype(jnp.float32)  # [N, He, Wd]
        return down.reshape(N, He * Wd)

    # --- OpensetSegmenter.encode / forward ---------------------------------
    def encode(self, img, masks, boxes):
        img_chw = jnp.transpose(img, (2, 0, 1)).astype(jnp.float32)    # HWC -> CHW
        masks_to_use = None if self.use_dense else masks
        boxed_patches, masked_patches = self._patch_extractor(
            img_chw, boxes, masks_to_use)
        N = boxed_patches.shape[0]

        img_norm = self._normalize(img_chw)                            # preprocess
        clip_img = self._center_crop(img_norm, self.input_size)

        # One batched encoder matmul for: boxed patches, CLIP crop, (masked).
        rows = [boxed_patches.reshape(N, -1), clip_img.reshape(1, -1)]
        if masked_patches is not None:
            rows.append(masked_patches.reshape(N, -1))
        enc_in = jnp.concatenate(rows, axis=0)                         # [M, 3*S*S]
        feats_all = pallas_matmul_bf16(enc_in, self.w_enc)             # [M, L] f32

        boxed_features = feats_all[:N]
        img_embedding = feats_all[N]

        if not self.use_dense:
            masked_features = feats_all[N + 1:2 * N + 1]
            # 4 KiB VPU add; XLA fuses it with the slices (per perf review).
            features = 0.5 * (boxed_features + masked_features)
        else:
            He, Wd = img_norm.shape[1] // 2, img_norm.shape[2] // 2
            pixel_slab = self._dense_pixel_slab(img_norm)              # [HW, 8]
            masks_flat = self._downscale_masks(masks, He, Wd)          # [N, HW]
            features = pallas_pool_and_blend(
                pixel_slab, masks_flat, boxed_features, self.w_dense,
                self.dense_ratio, ones_col=_ONES_COL)

        return Results(masks, boxes, features, boxed_patches,
                       masked_patches, img_embedding)

    def forward(self, rgb_img):
        masks, boxes = self._segmenter(rgb_img)
        masks, boxes = self._segment_refinement(masks, boxes)
        img = jnp.asarray(rgb_img)
        return self.encode(img, masks, boxes)


# ---------------------------------------------------------------------------
if __name__ == "__main__":
    key = jax.random.PRNGKey(0)
    k_img, k_params = jax.random.split(key)

    H = W = 32
    rgb_img = jax.random.randint(k_img, (H, W, 3), 0, 256,
                                 dtype=jnp.int32).astype(jnp.uint8)

    # dense path (fused pool_masked_features + dense-encoder + blend kernel)
    model_dense = OpensetSegmenterJAX(k_params, use_dense=True)
    res_dense = model_dense.forward(rgb_img)
    jax.block_until_ready(res_dense.features)
    jax.block_until_ready(res_dense.image_embedding)
    assert res_dense.features.shape == (8, 128)
    assert res_dense.image_embedding.shape == (128,)

    # loose numerical check of the reassociated dense path vs plain-JAX f32
    ref_boxed = res_dense.boxed_patches.reshape(8, -1) @ model_dense.w_enc
    img_chw = jnp.transpose(jnp.asarray(rgb_img, jnp.float32), (2, 0, 1))
    img_norm = model_dense._normalize(img_chw)
    slab = model_dense._dense_pixel_slab(img_norm)
    emb = slab @ model_dense.w_dense                                   # [HW, L]
    mflat = model_dense._downscale_masks(res_dense.masks, H // 2, W // 2)
    nv = mflat.sum(axis=1, keepdims=True)
    valid = (nv > 0).astype(jnp.float32)
    dense_feats = (mflat @ emb) / jnp.maximum(nv, 1.0)
    ratios = model_dense.dense_ratio * valid
    ref_features = (1.0 - ratios) * ref_boxed + ratios * dense_feats
    assert jnp.allclose(res_dense.features, ref_features, rtol=0.1, atol=0.1)

    # non-dense path (single batched encoder matmul + fused-by-XLA average)
    model_plain = OpensetSegmenterJAX(k_params, use_dense=False)
    res_plain = model_plain.forward(rgb_img)
    jax.block_until_ready(res_plain.features)
    assert res_plain.features.shape == (8, 128)
    assert res_plain.masked_patches.shape == (8, 3, 16, 16)

    print("KERNEL_OK")
</pallas_src>

<mosaic_0001>
module attributes {stable_mosaic.version = 11 : i64} {
  func.func @_matmul_bf16_kernel(%arg0: i32, %arg1: memref<16x768xbf16, #tpu.memory_space<vmem>>, %arg2: memref<768x128xbf16, #tpu.memory_space<vmem>>, %arg3: memref<16x128xf32, #tpu.memory_space<vmem>>) attributes {dimension_semantics = [#tpu.dimension_semantics<arbitrary>], iteration_bounds = array<i64: 1>, scalar_prefetch = 0 : i64, scratch_operands = 0 : i64, tpu.core_type = #tpu.core_type<tc>, window_params = [{pipeline_mode = #tpu.pipeline_mode<synchronous>, transform_indices = @transform_0, window_bounds = array<i64: 16, 768>}, {pipeline_mode = #tpu.pipeline_mode<synchronous>, transform_indices = @transform_1, window_bounds = array<i64: 768, 128>}, {pipeline_mode = #tpu.pipeline_mode<synchronous>, transform_indices = @transform_2, window_bounds = array<i64: 16, 128>}]} {
    %c0 = arith.constant 0 : index
    %c0_0 = arith.constant 0 : index
    %0 = vector.load %arg1[%c0, %c0_0] : memref<16x768xbf16, #tpu.memory_space<vmem>>, vector<16x768xbf16>
    %c0_1 = arith.constant 0 : index
    %c0_2 = arith.constant 0 : index
    %1 = vector.load %arg2[%c0_1, %c0_2] : memref<768x128xbf16, #tpu.memory_space<vmem>>, vector<768x128xbf16>
    %cst = arith.constant dense<0.000000e+00> : vector<16x128xf32>
    %2 = tpu.matmul %0, %1, %cst {dimension_numbers = #tpu.dot_dimension_numbers<[1], [0], [0], [1], [0, 0, 1, 1], [], []>} : vector<16x768xbf16>, vector<768x128xbf16>, vector<16x128xf32> -> vector<16x128xf32>
    %c0_3 = arith.constant 0 : index
    %c0_4 = arith.constant 0 : index
    %3 = vector.load %arg3[%c0_3, %c0_4] : memref<16x128xf32, #tpu.memory_space<vmem>>, vector<16x128xf32>
    tpu.vector_store %arg3[%c0_3, %c0_4], %2 {strides = array<i32>} : memref<16x128xf32, #tpu.memory_space<vmem>>, vector<16x128xf32>,
    return
  }
  func.func @transform_0(%arg0: i32) -> (i32, i32) {
    %c0_i32 = arith.constant 0 : i32
    %c0_i32_0 = arith.constant 0 : i32
    %c0_i32_1 = arith.constant 0 : i32
    return %c0_i32, %c0_i32_0 : i32, i32
  }
  func.func @transform_1(%arg0: i32) -> (i32, i32) {
    %c0_i32 = arith.constant 0 : i32
    %c0_i32_0 = arith.constant 0 : i32
    %c0_i32_1 = arith.constant 0 : i32
    return %c0_i32, %c0_i32_0 : i32, i32
  }
  func.func @transform_2(%arg0: i32) -> (i32, i32) {
    %c0_i32 = arith.constant 0 : i32
    %c0_i32_0 = arith.constant 0 : i32
    %c0_i32_1 = arith.constant 0 : i32
    return %c0_i32, %c0_i32_0 : i32, i32
  }
}

</mosaic_0001>

<llo_original>
// kernel: tpu_custom_call.1
$region0: #{tpu_custom_call.1}
  #allocation0 [shape = 'u32[]', space=smem, size = 0x4, offset = 0x4, fixed_abs, tag = 'smem constant byte address 0x4 - core index']
  #allocation1 [shape = 'u32[144,128]{1,0:T(1,128)}', space=vmem, size = 0x12000, scoped, tag = 'internal scratch']
  %s0 = inlined_call_operand.hbm [shape: bf16[16,768], index: 0, kind: input, shape index: {}]
  %s1 = inlined_call_operand.hbm [shape: bf16[768,128], index: 1, kind: input, shape index: {}]
  %s2 = inlined_call_operand.hbm [shape: f32[16,128], index: 2, kind: output, shape index: {}]
  %s3 = sld [smem:[#allocation0]]
  $region26: #{tpu_custom_call.1} parent=0
    _
  %s5 = ssub.s32 1, %s3
  %s6 = scalar_select 0, %s5, %s3
  $region1: #{tpu_custom_call.1} parent=0
    #allocation2 [shape = 'u8[24576]{0}', space=vmem, size = 0x6000, scoped, tag = 'input window, operand 0, single buffered']
    #allocation3 [shape = 's32[1]{0}', space=sflag, size = 0x4, scoped, tag = 'scoped memory for tpu_custom_call.1']
    #allocation4 [shape = 's32[1]{0}', space=sflag, size = 0x4, scoped, tag = 'scoped memory for tpu_custom_call.1']
    #allocation5 [shape = 'u8[196608]{0}', space=vmem, size = 0x30000, scoped, tag = 'input window, operand 1, single buffered']
    #allocation6 [shape = 's32[1]{0}', space=sflag, size = 0x4, scoped, tag = 'scoped memory for tpu_custom_call.1']
    #allocation7 [shape = 'u8[8192]{0}', space=vmem, size = 0x2000, scoped, tag = 'output window, operand 0, single buffered']
    %7 = vsyncpa [#allocation3], 0
    %8 = vsyncpa [#allocation6], 0
    %9 = vsyncpa [#allocation4], 0
    // Predicated region
    $region2: #{tpu_custom_call.1} parent=1 // pred_check
      _
    $region3: #{tpu_custom_call.1} parent=1 // pred_check_branch
      %11 = sbr.rel (0) target = $region5
    $region4: #{tpu_custom_call.1} parent=1 // pred_region
      %s13 = ssub.s32 768, 768
      %14 = vsyncadd [#allocation3], %s13
      %s15 = sshll.u32 [#allocation2], 4
      %s16 = int_to_ptr.vmem [resolvable:$true] %s15
      %21 = dma.hbm_to_vmem [thread:$0]  %s0, 768, %s16, [#allocation3], 384, 384, 24
    $region5: #{tpu_custom_call.1} parent=1 // pred_fallthru
      _
    // Predicated region
    $region6: #{tpu_custom_call.1} parent=1 // pred_check
      _
    $region7: #{tpu_custom_call.1} parent=1 // pred_check_branch
      %23 = sbr.rel (0) target = $region9
    $region8: #{tpu_custom_call.1} parent=1 // pred_region
      %s25 = ssub.s32 6144, 6144
      %26 = vsyncadd [#allocation6], %s25
      %s27 = sshll.u32 [#allocation5], 4
      %s28 = int_to_ptr.vmem [resolvable:$true] %s27
      %33 = dma.hbm_to_vmem [thread:$0]  %s1, 6144, %s28, [#allocation6], 64, 64, 4
    $region9: #{tpu_custom_call.1} parent=1 // pred_fallthru
      _
    // Predicated region
    $region10: #{tpu_custom_call.1} parent=1 // pred_check
      _
    $region11: #{tpu_custom_call.1} parent=1 // pred_check_branch
      %35 = sbr.rel (0) target = $region13
    $region12: #{tpu_custom_call.1} parent=1 // pred_region
      %36 = dma.done [#allocation3], 768
    $region13: #{tpu_custom_call.1} parent=1 // pred_fallthru
      _
    // Predicated region
    $region14: #{tpu_custom_call.1} parent=1 // pred_check
      _
    $region15: #{tpu_custom_call.1} parent=1 // pred_check_branch
      %38 = sbr.rel (0) target = $region17
    $region16: #{tpu_custom_call.1} parent=1 // pred_region
      %39 = dma.done [#allocation6], 6144
    $region17: #{tpu_custom_call.1} parent=1 // pred_fallthru
      _
    %v41 = vld [vmem:[#allocation2] sm:$0xff]
    %v42 = vld [vmem:[#allocation2 + $0x8] sm:$0xff]
    %v43 = vld [vmem:[#allocation2 + $0x10] sm:$0xff]
    %v44 = vld [vmem:[#allocation2 + $0x18] sm:$0xff]
    %v45 = vld [vmem:[#allocation2 + $0x20] sm:$0xff]
    %v46 = vld [vmem:[#allocation2 + $0x28] sm:$0xff]
    %v47 = vld [vmem:[#allocation5] sm:$0xf]
    %v48 = vld [vmem:[#allocation5 + $0x4] sm:$0xf]
    %v49 = vld [vmem:[#allocation5 + $0x8] sm:$0xf]
    %v50 = vld [vmem:[#allocation5 + $0xc] sm:$0xf]
    %v51 = vld [vmem:[#allocation5 + $0x10] sm:$0xf]
    %v52 = vld [vmem:[#allocation5 + $0x14] sm:$0xf]
    %v53 = vld [vmem:[#allocation5 + $0x18] sm:$0xf]
    %v54 = vld [vmem:[#allocation5 + $0x1c] sm:$0xf]
    %v55 = vld [vmem:[#allocation5 + $0x20] sm:$0xf]
    %v56 = vld [vmem:[#allocation5 + $0x24] sm:$0xf]
    %v57 = vld [vmem:[#allocation5 + $0x28] sm:$0xf]
    %v58 = vld [vmem:[#allocation5 + $0x2c] sm:$0xf]
    %v59 = vld [vmem:[#allocation5 + $0x30] sm:$0xf]
    %v60 = vld [vmem:[#allocation5 + $0x34] sm:$0xf]
    %v61 = vld [vmem:[#allocation5 + $0x38] sm:$0xf]
    %v62 = vld [vmem:[#allocation5 + $0x3c] sm:$0xf]
    %v63 = vld [vmem:[#allocation5 + $0x40] sm:$0xf]
    %v64 = vld [vmem:[#allocation5 + $0x44] sm:$0xf]
    %v65 = vld [vmem:[#allocation5 + $0x48] sm:$0xf]
    %v66 = vld [vmem:[#allocation5 + $0x4c] sm:$0xf]
    %v67 = vld [vmem:[#allocation5 + $0x50] sm:$0xf]
    %v68 = vld [vmem:[#allocation5 + $0x54] sm:$0xf]
    %v69 = vld [vmem:[#allocation5 + $0x58] sm:$0xf]
    %v70 = vld [vmem:[#allocation5 + $0x5c] sm:$0xf]
    %v71 = vld [vmem:[#allocation5 + $0x60] sm:$0xf]
    %v72 = vld [vmem:[#allocation5 + $0x64] sm:$0xf]
    %v73 = vld [vmem:[#allocation5 + $0x68] sm:$0xf]
    %v74 = vld [vmem:[#allocation5 + $0x6c] sm:$0xf]
    %v75 = vld [vmem:[#allocation5 + $0x70] sm:$0xf]
    %v76 = vld [vmem:[#allocation5 + $0x74] sm:$0xf]
    %v77 = vld [vmem:[#allocation5 + $0x78] sm:$0xf]
    %v78 = vld [vmem:[#allocation5 + $0x7c] sm:$0xf]
    %v79 = vld [vmem:[#allocation5 + $0x80] sm:$0xf]
    %v80 = vld [vmem:[#allocation5 + $0x84] sm:$0xf]
    %v81 = vld [vmem:[#allocation5 + $0x88] sm:$0xf]
    %v82 = vld [vmem:[#allocation5 + $0x8c] sm:$0xf]
    %v83 = vld [vmem:[#allocation5 + $0x90] sm:$0xf]
    %v84 = vld [vmem:[#allocation5 + $0x94] sm:$0xf]
    %v85 = vld [vmem:[#allocation5 + $0x98] sm:$0xf]
    %v86 = vld [vmem:[#allocation5 + $0x9c] sm:$0xf]
    %v87 = vld [vmem:[#allocation5 + $0xa0] sm:$0xf]
    %v88 = vld [vmem:[#allocation5 + $0xa4] sm:$0xf]
    %v89 = vld [vmem:[#allocation5 + $0xa8] sm:$0xf]
    %v90 = vld [vmem:[#allocation5 + $0xac] sm:$0xf]
    %v91 = vld [vmem:[#allocation5 + $0xb0] sm:$0xf]
    %v92 = vld [vmem:[#allocation5 + $0xb4] sm:$0xf]
    %v93 = vld [vmem:[#allocation5 + $0xb8] sm:$0xf]
    %v94 = vld [vmem:[#allocation5 + $0xbc] sm:$0xf]
    %v95 = vld [vmem:[#allocation5 + $0xc0] sm:$0xf]
    %v96 = vld [vmem:[#allocation5 + $0xc4] sm:$0xf]
    %v97 = vld [vmem:[#allocation5 + $0xc8] sm:$0xf]
    %v98 = vld [vmem:[#allocation5 + $0xcc] sm:$0xf]
    %v99 = vld [vmem:[#allocation5 + $0xd0] sm:$0xf]
    %v100 = vld [vmem:[#allocation5 + $0xd4] sm:$0xf]
    %v101 = vld [vmem:[#allocation5 + $0xd8] sm:$0xf]
    %v102 = vld [vmem:[#allocation5 + $0xdc] sm:$0xf]
    %v103 = vld [vmem:[#allocation5 + $0xe0] sm:$0xf]
    %v104 = vld [vmem:[#allocation5 + $0xe4] sm:$0xf]
    %v105 = vld [vmem:[#allocation5 + $0xe8] sm:$0xf]
    %v106 = vld [vmem:[#allocation5 + $0xec] sm:$0xf]
    %v107 = vld [vmem:[#allocation5 + $0xf0] sm:$0xf]
    %v108 = vld [vmem:[#allocation5 + $0xf4] sm:$0xf]
    %v109 = vld [vmem:[#allocation5 + $0xf8] sm:$0xf]
    %v110 = vld [vmem:[#allocation5 + $0xfc] sm:$0xf]
    %v111 = vld [vmem:[#allocation5 + $0x100] sm:$0xf]
    %v112 = vld [vmem:[#allocation5 + $0x104] sm:$0xf]
    %v113 = vld [vmem:[#allocation5 + $0x108] sm:$0xf]
    %v114 = vld [vmem:[#allocation5 + $0x10c] sm:$0xf]
    %v115 = vld [vmem:[#allocation5 + $0x110] sm:$0xf]
    %v116 = vld [vmem:[#allocation5 + $0x114] sm:$0xf]
    %v117 = vld [vmem:[#allocation5 + $0x118] sm:$0xf]
    %v118 = vld [vmem:[#allocation5 + $0x11c] sm:$0xf]
    %v119 = vld [vmem:[#allocation5 + $0x120] sm:$0xf]
    %v120 = vld [vmem:[#allocation5 + $0x124] sm:$0xf]
    %v121 = vld [vmem:[#allocation5 + $0x128] sm:$0xf]
    %v122 = vld [vmem:[#allocation5 + $0x12c] sm:$0xf]
    %v123 = vld [vmem:[#allocation5 + $0x130] sm:$0xf]
    %v124 = vld [vmem:[#allocation5 + $0x134] sm:$0xf]
    %v125 = vld [vmem:[#allocation5 + $0x138] sm:$0xf]
    %v126 = vld [vmem:[#allocation5 + $0x13c] sm:$0xf]
    %v127 = vld [vmem:[#allocation5 + $0x140] sm:$0xf]
    %v128 = vld [vmem:[#allocation5 + $0x144] sm:$0xf]
    %v129 = vld [vmem:[#allocation5 + $0x148] sm:$0xf]
    %v130 = vld [vmem:[#allocation5 + $0x14c] sm:$0xf]
    %v131 = vld [vmem:[#allocation5 + $0x150] sm:$0xf]
    %v132 = vld [vmem:[#allocation5 + $0x154] sm:$0xf]
    %v133 = vld [vmem:[#allocation5 + $0x158] sm:$0xf]
    %v134 = vld [vmem:[#allocation5 + $0x15c] sm:$0xf]
    %v135 = vld [vmem:[#allocation5 + $0x160] sm:$0xf]
    %v136 = vld [vmem:[#allocation5 + $0x164] sm:$0xf]
    %v137 = vld [vmem:[#allocation5 + $0x168] sm:$0xf]
    %v138 = vld [vmem:[#allocation5 + $0x16c] sm:$0xf]
    %v139 = vld [vmem:[#allocation5 + $0x170] sm:$0xf]
    %v140 = vld [vmem:[#allocation5 + $0x174] sm:$0xf]
    %v141 = vld [vmem:[#allocation5 + $0x178] sm:$0xf]
    %v142 = vld [vmem:[#allocation5 + $0x17c] sm:$0xf]
    %v149 = vunpack.c.l.b16 %v41
    %v150 = vunpack.c.h.b16 %v41
    %v151 = vunpack.c.l.b16 %v42
    %v152 = vunpack.c.h.b16 %v42
    %v153 = vunpack.c.l.b16 %v43
    %v154 = vunpack.c.h.b16 %v43
    %v155 = vunpack.c.l.b16 %v44
    %v156 = vunpack.c.h.b16 %v44
    %v157 = vunpack.c.l.b16 %v45
    %v158 = vunpack.c.h.b16 %v45
    %v159 = vunpack.c.l.b16 %v46
    %v160 = vunpack.c.h.b16 %v46
    %v161 = vpack.c.b16 %v155, %v149
    %v162 = vpack.c.b16 %v156, %v150
    %v163 = vpack.c.b16 %v157, %v151
    %v164 = vpack.c.b16 %v158, %v152
    %v165 = vpack.c.b16 %v159, %v153
    %v166 = vpack.c.b16 %v160, %v154
    %v269 = vunpack.c.l.b16 %v47
    %v270 = vunpack.c.l.b16 %v48
    %v271 = vunpack.c.l.b16 %v49
    %v272 = vunpack.c.l.b16 %v50
    %v273 = vunpack.c.l.b16 %v51
    %v274 = vunpack.c.l.b16 %v52
    %v275 = vunpack.c.l.b16 %v53
    %v276 = vunpack.c.l.b16 %v54
    %v277 = vunpack.c.l.b16 %v55
    %v278 = vunpack.c.l.b16 %v56
    %v279 = vunpack.c.l.b16 %v57
    %v280 = vunpack.c.l.b16 %v58
    %v281 = vunpack.c.l.b16 %v59
    %v282 = vunpack.c.l.b16 %v60
    %v283 = vunpack.c.l.b16 %v61
    %v284 = vunpack.c.l.b16 %v62
    %v285 = vunpack.c.l.b16 %v63
    %v286 = vunpack.c.l.b16 %v64
    %v287 = vunpack.c.l.b16 %v65
    %v288 = vunpack.c.l.b16 %v66
    %v289 = vunpack.c.l.b16 %v67
    %v290 = vunpack.c.l.b16 %v68
    %v291 = vunpack.c.l.b16 %v69
    %v292 = vunpack.c.l.b16 %v70
    %v293 = vunpack.c.l.b16 %v71
    %v294 = vunpack.c.l.b16 %v72
    %v295 = vunpack.c.l.b16 %v73
    %v296 = vunpack.c.l.b16 %v74
    %v297 = vunpack.c.l.b16 %v75
    %v298 = vunpack.c.l.b16 %v76
    %v299 = vunpack.c.l.b16 %v77
    %v300 = vunpack.c.l.b16 %v78
    %v301 = vunpack.c.l.b16 %v79
    %v302 = vunpack.c.l.b16 %v80
    %v303 = vunpack.c.l.b16 %v81
    %v304 = vunpack.c.l.b16 %v82
    %v305 = vunpack.c.l.b16 %v83
    %v306 = vunpack.c.l.b16 %v84
    %v307 = vunpack.c.l.b16 %v85
    %v308 = vunpack.c.l.b16 %v86
    %v309 = vunpack.c.l.b16 %v87
    %v310 = vunpack.c.l.b16 %v88
    %v311 = vunpack.c.l.b16 %v89
    %v312 = vunpack.c.l.b16 %v90
    %v313 = vunpack.c.l.b16 %v91
    %v314 = vunpack.c.l.b16 %v92
    %v315 = vunpack.c.l.b16 %v93
    %v316 = vunpack.c.l.b16 %v94
    %v317 = vunpack.c.l.b16 %v95
    %v318 = vunpack.c.l.b16 %v96
    %v319 = vunpack.c.l.b16 %v97
    %v320 = vunpack.c.l.b16 %v98
    %v321 = vunpack.c.l.b16 %v99
    %v322 = vunpack.c.l.b16 %v100
    %v323 = vunpack.c.l.b16 %v101
    %v324 = vunpack.c.l.b16 %v102
    %v325 = vunpack.c.l.b16 %v103
    %v326 = vunpack.c.l.b16 %v104
    %v327 = vunpack.c.l.b16 %v105
    %v328 = vunpack.c.l.b16 %v106
    %v329 = vunpack.c.l.b16 %v107
    %v330 = vunpack.c.l.b16 %v108
    %v331 = vunpack.c.l.b16 %v109
    %v332 = vunpack.c.l.b16 %v110
    %v333 = vunpack.c.l.b16 %v111
    %v334 = vunpack.c.l.b16 %v112
    %v335 = vunpack.c.l.b16 %v113
    %v336 = vunpack.c.l.b16 %v114
    %v337 = vunpack.c.l.b16 %v115
    %v338 = vunpack.c.l.b16 %v116
    %v339 = vunpack.c.l.b16 %v117
    %v340 = vunpack.c.l.b16 %v118
    %v341 = vunpack.c.l.b16 %v119
    %v342 = vunpack.c.l.b16 %v120
    %v343 = vunpack.c.l.b16 %v121
    %v344 = vunpack.c.l.b16 %v122
    %v345 = vunpack.c.l.b16 %v123
    %v346 = vunpack.c.l.b16 %v124
    %v347 = vunpack.c.l.b16 %v125
    %v348 = vunpack.c.l.b16 %v126
    %v349 = vunpack.c.l.b16 %v127
    %v350 = vunpack.c.l.b16 %v128
    %v351 = vunpack.c.l.b16 %v129
    %v352 = vunpack.c.l.b16 %v130
    %v353 = vunpack.c.l.b16 %v131
    %v354 = vunpack.c.l.b16 %v132
    %v355 = vunpack.c.l.b16 %v133
    %v356 = vunpack.c.l.b16 %v134
    %v357 = vunpack.c.l.b16 %v135
    %v358 = vunpack.c.l.b16 %v136
    %v359 = vunpack.c.l.b16 %v137
    %v360 = vunpack.c.l.b16 %v138
    %v361 = vunpack.c.l.b16 %v139
    %v362 = vunpack.c.l.b16 %v140
    %v363 = vunpack.c.l.b16 %v141
    %v364 = vunpack.c.l.b16 %v142
    %v365 = vpack.c.b16 %v270, %v269
    %v366 = vpack.c.b16 %v272, %v271
    %v367 = vpack.c.b16 %v274, %v273
    %v368 = vpack.c.b16 %v276, %v275
    %v369 = vpack.c.b16 %v278, %v277
    %v370 = vpack.c.b16 %v280, %v279
    %v371 = vpack.c.b16 %v282, %v281
    %v372 = vpack.c.b16 %v284, %v283
    %v373 = vpack.c.b16 %v286, %v285
    %v374 = vpack.c.b16 %v288, %v287
    %v375 = vpack.c.b16 %v290, %v289
    %v376 = vpack.c.b16 %v292, %v291
    %v377 = vpack.c.b16 %v294, %v293
    %v378 = vpack.c.b16 %v296, %v295
    %v379 = vpack.c.b16 %v298, %v297
    %v380 = vpack.c.b16 %v300, %v299
    %v381 = vpack.c.b16 %v302, %v301
    %v382 = vpack.c.b16 %v304, %v303
    %v383 = vpack.c.b16 %v306, %v305
    %v384 = vpack.c.b16 %v308, %v307
    %v385 = vpack.c.b16 %v310, %v309
    %v386 = vpack.c.b16 %v312, %v311
    %v387 = vpack.c.b16 %v314, %v313
    %v388 = vpack.c.b16 %v316, %v315
    %v389 = vpack.c.b16 %v318, %v317
    %v390 = vpack.c.b16 %v320, %v319
    %v391 = vpack.c.b16 %v322, %v321
    %v392 = vpack.c.b16 %v324, %v323
    %v393 = vpack.c.b16 %v326, %v325
    %v394 = vpack.c.b16 %v328, %v327
    %v395 = vpack.c.b16 %v330, %v329
    %v396 = vpack.c.b16 %v332, %v331
    %v397 = vpack.c.b16 %v334, %v333
    %v398 = vpack.c.b16 %v336, %v335
    %v399 = vpack.c.b16 %v338, %v337
    %v400 = vpack.c.b16 %v340, %v339
    %v401 = vpack.c.b16 %v342, %v341
    %v402 = vpack.c.b16 %v344, %v343
    %v403 = vpack.c.b16 %v346, %v345
    %v404 = vpack.c.b16 %v348, %v347
    %v405 = vpack.c.b16 %v350, %v349
    %v406 = vpack.c.b16 %v352, %v351
    %v407 = vpack.c.b16 %v354, %v353
    %v408 = vpack.c.b16 %v356, %v355
    %v409 = vpack.c.b16 %v358, %v357
    %v410 = vpack.c.b16 %v360, %v359
    %v411 = vpack.c.b16 %v362, %v361
    %v412 = vpack.c.b16 %v364, %v363
    %461 = vmatprep.subr.bf16.mxu0 0
    %462 = vmatpush1.bf16.msra.mxu0 %v365
    %463 = vmatprep.subr.bf16.mxu0 0
    %464 = vmatpush1.bf16.msra.mxu0 %v366
    %465 = vmatprep.subr.bf16.mxu0 0
    %466 = vmatpush1.bf16.msra.mxu0 %v367
    %467 = vmatprep.subr.bf16.mxu0 0
    %468 = vmatpush1.bf16.msra.mxu0 %v368
    %469 = vmatprep.subr.bf16.mxu0 0
    %470 = vmatpush1.bf16.msra.mxu0 %v369
    %471 = vmatprep.subr.bf16.mxu0 0
    %472 = vmatpush1.bf16.msra.mxu0 %v370
    %473 = vmatprep.subr.bf16.mxu0 0
    %474 = vmatpush1.bf16.msra.mxu0 %v371
    %475 = vmatprep.subr.bf16.mxu0 0
    %476 = vmatpush1.bf16.msra.mxu0 %v372
    %477 = vmatprep.subr.bf16.mxu0 0
    %478 = vmatpush1.bf16.msra.mxu0 %v373
    %479 = vmatprep.subr.bf16.mxu0 0
    %480 = vmatpush1.bf16.msra.mxu0 %v374
    %481 = vmatprep.subr.bf16.mxu0 0
    %482 = vmatpush1.bf16.msra.mxu0 %v375
    %483 = vmatprep.subr.bf16.mxu0 0
    %484 = vmatpush1.bf16.msra.mxu0 %v376
    %485 = vmatprep.subr.bf16.mxu0 0
    %486 = vmatpush1.bf16.msra.mxu0 %v377
    %487 = vmatprep.subr.bf16.mxu0 0
    %488 = vmatpush1.bf16.msra.mxu0 %v378
    %489 = vmatprep.subr.bf16.mxu0 0
    %490 = vmatpush1.bf16.msra.mxu0 %v379
    %491 = vmatprep.subr.bf16.mxu0 0
    %492 = vmatpush1.bf16.msra.mxu0 %v380
    %493 = vmatprep.mubr.bf16.mxu0 %v162
    %494 = vmatmul.mubr.bf16.gmra.mrb[0].mxu0 %v161
    %v495 = vpop.f32.mrb[0].mxu0
    %v496 = vadd.f32 0.0, %v495
    %v497 = vpop.f32.mrb[0].mxu0
    %v498 = vpop.f32.mrb[0].mxu0
    %v499 = vadd.f32 0.0, %v498
    %v500 = vpop.f32.mrb[0].mxu0
    %501 = vdwg.mxu0
    %502 = vmatprep.subr.bf16.mxu0 0
    %503 = vmatpush1.bf16.msra.mxu0 %v381
    %504 = vmatprep.subr.bf16.mxu0 0
    %505 = vmatpush1.bf16.msra.mxu0 %v382
    %506 = vmatprep.subr.bf16.mxu0 0
    %507 = vmatpush1.bf16.msra.mxu0 %v383
    %508 = vmatprep.subr.bf16.mxu0 0
    %509 = vmatpush1.bf16.msra.mxu0 %v384
    %510 = vmatprep.subr.bf16.mxu0 0
    %511 = vmatpush1.bf16.msra.mxu0 %v385
    %512 = vmatprep.subr.bf16.mxu0 0
    %513 = vmatpush1.bf16.msra.mxu0 %v386
    %514 = vmatprep.subr.bf16.mxu0 0
    %515 = vmatpush1.bf16.msra.mxu0 %v387
    %516 = vmatprep.subr.bf16.mxu0 0
    %517 = vmatpush1.bf16.msra.mxu0 %v388
    %518 = vmatprep.subr.bf16.mxu0 0
    %519 = vmatpush1.bf16.msra.mxu0 %v389
    %520 = vmatprep.subr.bf16.mxu0 0
    %521 = vmatpush1.bf16.msra.mxu0 %v390
    %522 = vmatprep.subr.bf16.mxu0 0
    %523 = vmatpush1.bf16.msra.mxu0 %v391
    %524 = vmatprep.subr.bf16.mxu0 0
    %525 = vmatpush1.bf16.msra.mxu0 %v392
    %526 = vmatprep.subr.bf16.mxu0 0
    %527 = vmatpush1.bf16.msra.mxu0 %v393
    %528 = vmatprep.subr.bf16.mxu0 0
    %529 = vmatpush1.bf16.msra.mxu0 %v394
    %530 = vmatprep.subr.bf16.mxu0 0
    %531 = vmatpush1.bf16.msra.mxu0 %v395
    %532 = vmatprep.subr.bf16.mxu0 0
    %533 = vmatpush1.bf16.msra.mxu0 %v396
    %534 = vmatprep.mubr.bf16.mxu0 %v164
    %535 = vmatmul.mubr.bf16.gmra.mrb[0].mxu0 %v163
    %v536 = vpop.f32.mrb[0].mxu0
    %v537 = vadd.f32 %v496, %v536
    %v538 = vpop.f32.mrb[0].mxu0
    %v539 = vpop.f32.mrb[0].mxu0
    %v540 = vadd.f32 %v499, %v539
    %v541 = vpop.f32.mrb[0].mxu0
    %542 = vdwg.mxu0
    %543 = vmatprep.subr.bf16.mxu0 0
    %544 = vmatpush1.bf16.msra.mxu0 %v397
    %545 = vmatprep.subr.bf16.mxu0 0
    %546 = vmatpush1.bf16.msra.mxu0 %v398
    %547 = vmatprep.subr.bf16.mxu0 0
    %548 = vmatpush1.bf16.msra.mxu0 %v399
    %549 = vmatprep.subr.bf16.mxu0 0
    %550 = vmatpush1.bf16.msra.mxu0 %v400
    %551 = vmatprep.subr.bf16.mxu0 0
    %552 = vmatpush1.bf16.msra.mxu0 %v401
    %553 = vmatprep.subr.bf16.mxu0 0
    %554 = vmatpush1.bf16.msra.mxu0 %v402
    %555 = vmatprep.subr.bf16.mxu0 0
    %556 = vmatpush1.bf16.msra.mxu0 %v403
    %557 = vmatprep.subr.bf16.mxu0 0
    %558 = vmatpush1.bf16.msra.mxu0 %v404
    %559 = vmatprep.subr.bf16.mxu0 0
    %560 = vmatpush1.bf16.msra.mxu0 %v405
    %561 = vmatprep.subr.bf16.mxu0 0
    %562 = vmatpush1.bf16.msra.mxu0 %v406
    %563 = vmatprep.subr.bf16.mxu0 0
    %564 = vmatpush1.bf16.msra.mxu0 %v407
    %565 = vmatprep.subr.bf16.mxu0 0
    %566 = vmatpush1.bf16.msra.mxu0 %v408
    %567 = vmatprep.subr.bf16.mxu0 0
    %568 = vmatpush1.bf16.msra.mxu0 %v409
    %569 = vmatprep.subr.bf16.mxu0 0
    %570 = vmatpush1.bf16.msra.mxu0 %v410
    %571 = vmatprep.subr.bf16.mxu0 0
    %572 = vmatpush1.bf16.msra.mxu0 %v411
    %573 = vmatprep.subr.bf16.mxu0 0
    %574 = vmatpush1.bf16.msra.mxu0 %v412
    %575 = vmatprep.mubr.bf16.mxu0 %v166
    %576 = vmatmul.mubr.bf16.gmra.mrb[0].mxu0 %v165
    %v577 = vpop.f32.mrb[0].mxu0
    %v578 = vadd.f32 %v537, %v577
    %v579 = vpop.f32.mrb[0].mxu0
    %v580 = vpop.f32.mrb[0].mxu0
    %v581 = vadd.f32 %v540, %v580
    %v582 = vpop.f32.mrb[0].mxu0
    %583 = vdwg.mxu0
    %584 = vst [vmem:[#allocation7] sm:$0xff] %v578
    %585 = vst [vmem:[#allocation7 + $0x8] sm:$0xff] %v581
    // Predicated region
    $region18: #{tpu_custom_call.1} parent=1 // pred_check
      _
    $region19: #{tpu_custom_call.1} parent=1 // pred_check_branch
      %587 = sbr.rel (0) target = $region21
    $region20: #{tpu_custom_call.1} parent=1 // pred_region
      %s589 = ssub.s32 256, 256
      %590 = vsyncadd [#allocation4], %s589
      %s591 = sshll.u32 [#allocation7], 4
      %s592 = int_to_ptr.vmem [resolvable:$true] %s591
      %597 = dma.vmem_to_hbm [thread:$0]  %s592, 256, %s2, [#allocation4], 128, 128, 8
    $region21: #{tpu_custom_call.1} parent=1 // pred_fallthru
      _
    // Predicated region
    $region22: #{tpu_custom_call.1} parent=1 // pred_check
      _
    $region23: #{tpu_custom_call.1} parent=1 // pred_check_branch
      %599 = sbr.rel (0) target = $region25
    $region24: #{tpu_custom_call.1} parent=1 // pred_region
      %600 = dma.done [#allocation4], 256
    $region25: #{tpu_custom_call.1} parent=1 // pred_fallthru
      _
    %601 = vsyncpa [#allocation3], 1
    %602 = vsyncpa [#allocation6], 1
    %603 = vsyncpa [#allocation4], 1

</llo_original>
